<compile_context>
chip_gen: v6e
topology: v6e:2x2x1
jax: 0.10.0
libtpu: 0.0.40
codegen_flags: <defaults>
</compile_context>

<pallas_src>
import math
import functools

import jax
import jax.numpy as jnp
from jax.experimental import pallas as pl
from jax.experimental.pallas import tpu as pltpu


def _round_up(x, m):
    return ((x + m - 1) // m) * m


def _sha_kernel(x_ref, z_ref, mask_ref, wq_ref, wkv_ref, bq_ref, bkv_ref,
                *out_refs, scale, d_attn_p, flatten, full_outputs, compute_dtype):
    if full_outputs:
        q_ref, k_ref, v_ref, score_ref, attn_ref, vtilde_ref = out_refs
    else:
        attn_ref, vtilde_ref = out_refs

    b_blk, l_x, d_x = x_ref.shape
    _, l_z, d_z = z_ref.shape

    wq = wq_ref[...]        # (d_x, d_attn_p), compute_dtype
    wkv = wkv_ref[...]      # (d_z, d_attn_p + d_out_p), compute_dtype
    bq = bq_ref[...]        # (1, d_attn_p) f32
    bkv = bkv_ref[...]      # (1, d_attn_p + d_out_p) f32

    # Projections: q = x @ w_q + b_q ; kv = z @ [w_k | w_v] + [b_k | b_v].
    # Merge batch into sublanes only when l is a multiple of 8 (free reshape).
    if flatten:
        xf = x_ref[...].reshape(b_blk * l_x, d_x).astype(compute_dtype)
        zf = z_ref[...].reshape(b_blk * l_z, d_z).astype(compute_dtype)
        q2 = jnp.dot(xf, wq, preferred_element_type=jnp.float32) + bq
        kv2 = jnp.dot(zf, wkv, preferred_element_type=jnp.float32) + bkv
        q = q2.reshape(b_blk, l_x, -1)
        kv = kv2.reshape(b_blk, l_z, -1)
    else:
        xf = x_ref[...].astype(compute_dtype)
        zf = z_ref[...].astype(compute_dtype)
        q = jnp.einsum("bld,df->blf", xf, wq,
                       preferred_element_type=jnp.float32) + bq
        kv = jnp.einsum("bld,df->blf", zf, wkv,
                        preferred_element_type=jnp.float32) + bkv

    # 128-aligned lane split of the fused z projection (free subview).
    k = kv[:, :, :d_attn_p]
    v = kv[:, :, d_attn_p:]

    if full_outputs:
        q_ref[...] = q.astype(q_ref.dtype)
        k_ref[...] = k.astype(k_ref.dtype)
        v_ref[...] = v.astype(v_ref.dtype)

    # Fold scale into q (l_x*d_attn elements) instead of the (l_x,l_z) score.
    q_s = (q * scale).astype(compute_dtype)
    k_c = k.astype(compute_dtype)

    # score = (q @ k^T) * scale, batched contraction on the feature axis.
    raw = jnp.einsum("bid,bjd->bij", q_s, k_c,
                     preferred_element_type=jnp.float32)

    mask_bool = mask_ref[...] != 0
    neg_min = float(jnp.finfo(jnp.float32).min)  # torch finfo(score.dtype).min
    score = jnp.where(mask_bool, raw, neg_min)
    if full_outputs:
        score_ref[...] = score.astype(score_ref.dtype)

    # Masked softmax over l_z.  Masked exponentials are zeroed directly; the
    # denominator is guarded so all-masked rows give 0 (== torch softmax*mask).
    m = jnp.max(score, axis=-1, keepdims=True)
    e = jnp.where(mask_bool, jnp.exp(score - m), 0.0)
    denom = jnp.sum(e, axis=-1, keepdims=True)
    denom = jnp.maximum(denom, float(jnp.finfo(jnp.float32).tiny))
    attn = e * pl.reciprocal(denom)              # exact reciprocal for parity
    attn_ref[...] = attn.astype(attn_ref.dtype)

    # vtilde = attention @ v
    vtilde = jnp.einsum("bij,bjd->bid", attn.astype(compute_dtype),
                        v.astype(compute_dtype),
                        preferred_element_type=jnp.float32)
    vtilde_ref[...] = vtilde.astype(vtilde_ref.dtype)


def _tpu_vmem_and_cores():
    """Best-effort hardware query; conservative defaults (v7x-like) otherwise."""
    vmem = 64 * 1024 * 1024
    cores = 2
    try:
        info = pltpu.get_tpu_info()
        vmem = int(getattr(info, "vmem_capacity_bytes", vmem))
        for attr in ("num_cores", "core_count", "tensorcore_count",
                     "num_tensorcores"):
            val = getattr(info, attr, None)
            if val:
                cores = int(val)
                break
    except Exception:
        pass
    return vmem, cores


def _choose_batch_block(b, per_batch_bytes, fixed_bytes, budget, prefer_two_steps):
    """Largest divisor of b whose estimated VMEM footprint fits the budget.
    When prefer_two_steps (multi-TensorCore chips), keep >= 2 grid steps so the
    'parallel' batch axis can shard across cores."""
    best = 1
    for cand in range(1, b + 1):
        if b % cand != 0:
            continue
        if fixed_bytes + cand * per_batch_bytes > budget:
            continue
        if prefer_two_steps and b > 1 and b // cand < 2:
            continue
        best = cand
    return best


@functools.partial(jax.jit,
                   static_argnames=("full_outputs", "batch_block", "compute_dtype"))
def single_head_attention(x, z, mask, w_q, w_k, w_v, b_q, b_k, b_v,
                          *, full_outputs=True, batch_block=None,
                          compute_dtype=jnp.bfloat16):
    b, l_x, d_x = x.shape
    _, l_z, d_z = z.shape
    d_attn = w_q.shape[1]
    d_out = w_v.shape[1]
    assert mask.shape == (b, l_x, l_z)
    scale = 1.0 / math.sqrt(d_attn)
    dt = x.dtype
    f32 = 4
    cd_size = jnp.dtype(compute_dtype).itemsize

    # Lane-pad feature dims to multiples of 128 (dense vst, aligned k|v split).
    d_attn_p = _round_up(d_attn, 128)
    d_out_p = _round_up(d_out, 128)

    def pad_cols(w, target):
        p = target - w.shape[-1]
        return w if p == 0 else jnp.pad(w, ((0, 0), (0, p)))

    def pad_vec(v_, target):
        p = target - v_.shape[0]
        return v_ if p == 0 else jnp.pad(v_, ((0, p),))

    w_q_p = pad_cols(w_q, d_attn_p).astype(compute_dtype)
    w_kv = jnp.concatenate([pad_cols(w_k, d_attn_p),
                            pad_cols(w_v, d_out_p)], axis=1).astype(compute_dtype)
    b_q2 = pad_vec(b_q, d_attn_p).reshape(1, d_attn_p).astype(jnp.float32)
    b_kv = jnp.concatenate([pad_vec(b_k, d_attn_p),
                            pad_vec(b_v, d_out_p)], axis=0)
    b_kv = b_kv.reshape(1, d_attn_p + d_out_p).astype(jnp.float32)

    # ---- VMEM-budgeted batch block (generation-aware). -----------------------
    vmem_cap, n_cores = _tpu_vmem_and_cores()
    in_blk = (l_x * d_x + l_z * d_z + l_x * l_z) * f32                 # x, z, mask
    if full_outputs:
        out_blk = (l_x * d_attn_p + l_z * d_attn_p + l_z * d_out_p
                   + 2 * l_x * l_z + l_x * d_out_p) * f32
    else:
        out_blk = (l_x * l_z + l_x * d_out_p) * f32
    inter_blk = (l_x * d_attn_p + l_z * (d_attn_p + d_out_p)
                 + 3 * l_x * l_z + l_x * d_out_p) * f32                # q, kv, score/e/attn
    per_batch = 2 * (in_blk + out_blk) + inter_blk                     # 2x = double-buffer
    fixed = 2 * ((d_x * d_attn_p + d_z * (d_attn_p + d_out_p)) * cd_size
                 + (2 * d_attn_p + d_out_p) * f32)                     # weights + biases
    budget = int(vmem_cap * 0.6)

    if batch_block is not None:
        b_blk = batch_block
    else:
        b_blk = _choose_batch_block(b, per_batch, fixed, budget,
                                    prefer_two_steps=(n_cores >= 2))
    assert b % b_blk == 0
    grid = (b // b_blk,)

    vmem_limit = int(min(0.9 * vmem_cap,
                         max(32 * 1024 * 1024,
                             fixed + b_blk * per_batch + (8 << 20))))

    flatten = (l_x % 8 == 0) and (l_z % 8 == 0)

    batch_spec = lambda shape: pl.BlockSpec(shape, lambda i: (i, 0, 0))
    full_spec = lambda shape: pl.BlockSpec(shape, lambda i: (0, 0))

    in_specs = [
        batch_spec((b_blk, l_x, d_x)),            # x
        batch_spec((b_blk, l_z, d_z)),            # z
        batch_spec((b_blk, l_x, l_z)),            # mask (original dtype, no pre-cast)
        full_spec((d_x, d_attn_p)),               # w_q (compute_dtype)
        full_spec((d_z, d_attn_p + d_out_p)),     # w_kv = [w_k | w_v]
        full_spec((1, d_attn_p)),                 # b_q
        full_spec((1, d_attn_p + d_out_p)),       # b_kv = [b_k | b_v]
    ]

    if full_outputs:
        out_shapes = (
            jax.ShapeDtypeStruct((b, l_x, d_attn_p), dt),   # q (padded)
            jax.ShapeDtypeStruct((b, l_z, d_attn_p), dt),   # k (padded)
            jax.ShapeDtypeStruct((b, l_z, d_out_p), dt),    # v (padded)
            jax.ShapeDtypeStruct((b, l_x, l_z), dt),        # score
            jax.ShapeDtypeStruct((b, l_x, l_z), dt),        # attention
            jax.ShapeDtypeStruct((b, l_x, d_out_p), dt),    # vtilde (padded)
        )
        out_specs = [
            batch_spec((b_blk, l_x, d_attn_p)),
            batch_spec((b_blk, l_z, d_attn_p)),
            batch_spec((b_blk, l_z, d_out_p)),
            batch_spec((b_blk, l_x, l_z)),
            batch_spec((b_blk, l_x, l_z)),
            batch_spec((b_blk, l_x, d_out_p)),
        ]
    else:
        out_shapes = (
            jax.ShapeDtypeStruct((b, l_x, l_z), dt),        # attention
            jax.ShapeDtypeStruct((b, l_x, d_out_p), dt),    # vtilde (padded)
        )
        out_specs = [
            batch_spec((b_blk, l_x, l_z)),
            batch_spec((b_blk, l_x, d_out_p)),
        ]

    grid_spec = pltpu.PrefetchScalarGridSpec(
        num_scalar_prefetch=0,
        grid=grid,
        in_specs=in_specs,
        out_specs=out_specs,
    )

    outs = pl.pallas_call(
        functools.partial(_sha_kernel, scale=scale, d_attn_p=d_attn_p,
                          flatten=flatten, full_outputs=full_outputs,
                          compute_dtype=compute_dtype),
        out_shape=out_shapes,
        grid_spec=grid_spec,
        compiler_params=pltpu.CompilerParams(
            dimension_semantics=("parallel",),
            vmem_limit_bytes=vmem_limit),
    )(x, z, mask, w_q_p, w_kv, b_q2, b_kv)

    if full_outputs:
        q_p, k_p, v_p, score, attn, vt_p = outs
        return {"q": q_p[..., :d_attn], "k": k_p[..., :d_attn],
                "v": v_p[..., :d_out], "score": score,
                "attention": attn, "vtilde": vt_p[..., :d_out]}
    attn, vt_p = outs
    return {"attention": attn, "vtilde": vt_p[..., :d_out]}


def _xavier_normal(key, shape, dtype=jnp.float32):
    fan_in, fan_out = shape
    std = math.sqrt(2.0 / (fan_in + fan_out))
    return std * jax.random.normal(key, shape, dtype)


if __name__ == "__main__":
    # Small shapes consistent with the module's forward.
    b, l_x, l_z = 2, 8, 8
    d_x, d_z, d_attn, d_out = 16, 16, 32, 32

    key = jax.random.PRNGKey(0)
    kx, kz, kq, kk, kv, km = jax.random.split(key, 6)

    x = jax.random.normal(kx, (b, l_x, d_x), jnp.float32)
    z = jax.random.normal(kz, (b, l_z, d_z), jnp.float32)
    mask = (jax.random.uniform(km, (b, l_x, l_z)) > 0.3).astype(jnp.float32)

    w_q = _xavier_normal(kq, (d_x, d_attn))
    w_k = _xavier_normal(kk, (d_z, d_attn))
    w_v = _xavier_normal(kv, (d_z, d_out))
    b_q = jnp.zeros((d_attn,), jnp.float32)
    b_k = jnp.zeros((d_attn,), jnp.float32)
    b_v = jnp.zeros((d_out,), jnp.float32)

    # Plain-JAX reference (module semantics).
    q_ref = x @ w_q + b_q
    k_ref = z @ w_k + b_k
    v_ref = z @ w_v + b_v
    score_ref = jnp.einsum("bik,bjk->bij", q_ref, k_ref) / math.sqrt(d_attn)
    score_ref = jnp.where(mask > 0, score_ref, jnp.finfo(jnp.float32).min)
    attn_ref = jax.nn.softmax(score_ref, axis=-1) * mask
    vtilde_ref = attn_ref @ v_ref

    # 1) Exact-parity path: f32 MXU operands.
    out = single_head_attention(x, z, mask, w_q, w_k, w_v, b_q, b_k, b_v,
                                compute_dtype=jnp.float32)
    jax.block_until_ready(out)
    assert jnp.allclose(out["q"], q_ref, atol=1e-5)
    assert jnp.allclose(out["k"], k_ref, atol=1e-5)
    assert jnp.allclose(out["v"], v_ref, atol=1e-5)
    assert jnp.allclose(out["score"], score_ref, atol=1e-4)
    assert jnp.allclose(out["attention"], attn_ref, atol=1e-4)
    assert jnp.allclose(out["vtilde"], vtilde_ref, atol=1e-4)

    # 2) Default production path: bf16 MXU operands, f32 accumulation.
    out_bf = single_head_attention(x, z, mask, w_q, w_k, w_v, b_q, b_k, b_v)
    jax.block_until_ready(out_bf)
    for name, ref in [("q", q_ref), ("k", k_ref), ("v", v_ref),
                      ("score", score_ref), ("attention", attn_ref),
                      ("vtilde", vtilde_ref)]:
        assert jnp.allclose(out_bf[name], ref, rtol=5e-2, atol=1e-1), name

    # 3) Reduced HBM-writeback path (attention + vtilde only).
    out_min = single_head_attention(x, z, mask, w_q, w_k, w_v, b_q, b_k, b_v,
                                    full_outputs=False, compute_dtype=jnp.float32)
    jax.block_until_ready(out_min)
    assert jnp.allclose(out_min["attention"], attn_ref, atol=1e-4)
    assert jnp.allclose(out_min["vtilde"], vtilde_ref, atol=1e-4)

    print("KERNEL_OK")
</pallas_src>

<mosaic_0001>
module attributes {stable_mosaic.version = 11 : i64} {
  func.func @_sha_kernel(%arg0: i32, %arg1: memref<1x8x16xf32, #tpu.memory_space<vmem>>, %arg2: memref<1x8x16xf32, #tpu.memory_space<vmem>>, %arg3: memref<1x8x8xf32, #tpu.memory_space<vmem>>, %arg4: memref<16x128xf32, #tpu.memory_space<vmem>>, %arg5: memref<16x256xf32, #tpu.memory_space<vmem>>, %arg6: memref<1x128xf32, #tpu.memory_space<vmem>>, %arg7: memref<1x256xf32, #tpu.memory_space<vmem>>, %arg8: memref<1x8x128xf32, #tpu.memory_space<vmem>>, %arg9: memref<1x8x128xf32, #tpu.memory_space<vmem>>, %arg10: memref<1x8x128xf32, #tpu.memory_space<vmem>>, %arg11: memref<1x8x8xf32, #tpu.memory_space<vmem>>, %arg12: memref<1x8x8xf32, #tpu.memory_space<vmem>>, %arg13: memref<1x8x128xf32, #tpu.memory_space<vmem>>) attributes {dimension_semantics = [#tpu.dimension_semantics<parallel>], iteration_bounds = array<i64: 2>, scalar_prefetch = 0 : i64, scratch_operands = 0 : i64, tpu.core_type = #tpu.core_type<tc>, window_params = [{transform_indices = @transform_0, window_bounds = array<i64: 1, 8, 16>}, {transform_indices = @transform_1, window_bounds = array<i64: 1, 8, 16>}, {transform_indices = @transform_2, window_bounds = array<i64: 1, 8, 8>}, {pipeline_mode = #tpu.pipeline_mode<synchronous>, transform_indices = @transform_3, window_bounds = array<i64: 16, 128>}, {pipeline_mode = #tpu.pipeline_mode<synchronous>, transform_indices = @transform_4, window_bounds = array<i64: 16, 256>}, {pipeline_mode = #tpu.pipeline_mode<synchronous>, transform_indices = @transform_5, window_bounds = array<i64: 1, 128>}, {pipeline_mode = #tpu.pipeline_mode<synchronous>, transform_indices = @transform_6, window_bounds = array<i64: 1, 256>}, {transform_indices = @transform_7, window_bounds = array<i64: 1, 8, 128>}, {transform_indices = @transform_8, window_bounds = array<i64: 1, 8, 128>}, {transform_indices = @transform_9, window_bounds = array<i64: 1, 8, 128>}, {transform_indices = @transform_10, window_bounds = array<i64: 1, 8, 8>}, {transform_indices = @transform_11, window_bounds = array<i64: 1, 8, 8>}, {transform_indices = @transform_12, window_bounds = array<i64: 1, 8, 128>}]} {
    %c0 = arith.constant 0 : index
    %c0_0 = arith.constant 0 : index
    %0 = vector.load %arg4[%c0, %c0_0] : memref<16x128xf32, #tpu.memory_space<vmem>>, vector<16x128xf32>
    %c0_1 = arith.constant 0 : index
    %c0_2 = arith.constant 0 : index
    %1 = vector.load %arg5[%c0_1, %c0_2] : memref<16x256xf32, #tpu.memory_space<vmem>>, vector<16x256xf32>
    %c0_3 = arith.constant 0 : index
    %c0_4 = arith.constant 0 : index
    %2 = vector.load %arg6[%c0_3, %c0_4] : memref<1x128xf32, #tpu.memory_space<vmem>>, vector<1x128xf32>
    %c0_5 = arith.constant 0 : index
    %c0_6 = arith.constant 0 : index
    %3 = vector.load %arg7[%c0_5, %c0_6] : memref<1x256xf32, #tpu.memory_space<vmem>>, vector<1x256xf32>
    %c0_7 = arith.constant 0 : index
    %c0_8 = arith.constant 0 : index
    %c0_9 = arith.constant 0 : index
    %4 = vector.load %arg1[%c0_7, %c0_8, %c0_9] : memref<1x8x16xf32, #tpu.memory_space<vmem>>, vector<1x8x16xf32>
    %5 = vector.shape_cast %4 : vector<1x8x16xf32> to vector<8x16xf32>
    %c0_10 = arith.constant 0 : index
    %c0_11 = arith.constant 0 : index
    %c0_12 = arith.constant 0 : index
    %6 = vector.load %arg2[%c0_10, %c0_11, %c0_12] : memref<1x8x16xf32, #tpu.memory_space<vmem>>, vector<1x8x16xf32>
    %7 = vector.shape_cast %6 : vector<1x8x16xf32> to vector<8x16xf32>
    %cst = arith.constant dense<0.000000e+00> : vector<8x128xf32>
    %8 = tpu.matmul %5, %0, %cst {dimension_numbers = #tpu.dot_dimension_numbers<[1], [0], [0], [1], [0, 0, 1, 1], [], []>} : vector<8x16xf32>, vector<16x128xf32>, vector<8x128xf32> -> vector<8x128xf32>
    %9 = vector.broadcast %2 : vector<1x128xf32> to vector<8x128xf32>
    %10 = arith.addf %8, %9 : vector<8x128xf32>
    %cst_13 = arith.constant dense<0.000000e+00> : vector<8x256xf32>
    %11 = tpu.matmul %7, %1, %cst_13 {dimension_numbers = #tpu.dot_dimension_numbers<[1], [0], [0], [1], [0, 0, 1, 1], [], []>} : vector<8x16xf32>, vector<16x256xf32>, vector<8x256xf32> -> vector<8x256xf32>
    %12 = vector.broadcast %3 : vector<1x256xf32> to vector<8x256xf32>
    %13 = arith.addf %11, %12 : vector<8x256xf32>
    %14 = vector.shape_cast %10 : vector<8x128xf32> to vector<1x8x128xf32>
    %15 = vector.shape_cast %13 : vector<8x256xf32> to vector<1x8x256xf32>
    %16 = vector.extract_strided_slice %15 {offsets = [0, 0, 0], sizes = [1, 8, 128], strides = [1, 1, 1]} : vector<1x8x256xf32> to vector<1x8x128xf32>
    %17 = vector.extract_strided_slice %15 {offsets = [0, 0, 128], sizes = [1, 8, 128], strides = [1, 1, 1]} : vector<1x8x256xf32> to vector<1x8x128xf32>
    %c0_14 = arith.constant 0 : index
    %c0_15 = arith.constant 0 : index
    %c0_16 = arith.constant 0 : index
    %18 = vector.load %arg8[%c0_14, %c0_15, %c0_16] : memref<1x8x128xf32, #tpu.memory_space<vmem>>, vector<1x8x128xf32>
    tpu.vector_store %arg8[%c0_14, %c0_15, %c0_16], %14 {strides = array<i32>} : memref<1x8x128xf32, #tpu.memory_space<vmem>>, vector<1x8x128xf32>,
    %c0_17 = arith.constant 0 : index
    %c0_18 = arith.constant 0 : index
    %c0_19 = arith.constant 0 : index
    %19 = vector.load %arg9[%c0_17, %c0_18, %c0_19] : memref<1x8x128xf32, #tpu.memory_space<vmem>>, vector<1x8x128xf32>
    tpu.vector_store %arg9[%c0_17, %c0_18, %c0_19], %16 {strides = array<i32>} : memref<1x8x128xf32, #tpu.memory_space<vmem>>, vector<1x8x128xf32>,
    %c0_20 = arith.constant 0 : index
    %c0_21 = arith.constant 0 : index
    %c0_22 = arith.constant 0 : index
    %20 = vector.load %arg10[%c0_20, %c0_21, %c0_22] : memref<1x8x128xf32, #tpu.memory_space<vmem>>, vector<1x8x128xf32>
    tpu.vector_store %arg10[%c0_20, %c0_21, %c0_22], %17 {strides = array<i32>} : memref<1x8x128xf32, #tpu.memory_space<vmem>>, vector<1x8x128xf32>,
    %cst_23 = arith.constant 0.176776692 : f32
    %21 = vector.broadcast %cst_23 : f32 to vector<1x8x128xf32>
    %22 = arith.mulf %14, %21 : vector<1x8x128xf32>
    "tpu.trace_start"() <{level = 10 : i32, message = "bid,bjd->bij"}> : () -> ()
    %cst_24 = arith.constant dense<0.000000e+00> : vector<1x8x8xf32>
    %23 = tpu.matmul %22, %16, %cst_24 {dimension_numbers = #tpu.dot_dimension_numbers<[2], [2], [1], [1], [0, 0, 0, 1, 1, 1], [0], [0]>} : vector<1x8x128xf32>, vector<1x8x128xf32>, vector<1x8x8xf32> -> vector<1x8x8xf32>
    "tpu.trace_stop"() : () -> ()
    %c0_25 = arith.constant 0 : index
    %c0_26 = arith.constant 0 : index
    %c0_27 = arith.constant 0 : index
    %24 = vector.load %arg3[%c0_25, %c0_26, %c0_27] : memref<1x8x8xf32, #tpu.memory_space<vmem>>, vector<1x8x8xf32>
    %cst_28 = arith.constant 0.000000e+00 : f32
    %25 = vector.broadcast %cst_28 : f32 to vector<1x8x8xf32>
    %26 = arith.cmpf one, %24, %25 : vector<1x8x8xf32>
    %cst_29 = arith.constant -3.40282347E+38 : f32
    %27 = vector.broadcast %cst_29 : f32 to vector<1x8x8xf32>
    %28 = arith.select %26, %23, %27 : vector<1x8x8xi1>, vector<1x8x8xf32>
    %c0_30 = arith.constant 0 : index
    %c0_31 = arith.constant 0 : index
    %c0_32 = arith.constant 0 : index
    %29 = vector.load %arg11[%c0_30, %c0_31, %c0_32] : memref<1x8x8xf32, #tpu.memory_space<vmem>>, vector<1x8x8xf32>
    tpu.vector_store %arg11[%c0_30, %c0_31, %c0_32], %28 {strides = array<i32>} : memref<1x8x8xf32, #tpu.memory_space<vmem>>, vector<1x8x8xf32>,
    %cst_33 = arith.constant dense<0xFF800000> : vector<1x8xf32>
    %30 = vector.multi_reduction <maximumf>, %28, %cst_33 [2] : vector<1x8x8xf32> to vector<1x8xf32>
    %31 = vector.shape_cast %30 : vector<1x8xf32> to vector<1x8x1xf32>
    %32 = vector.broadcast %31 : vector<1x8x1xf32> to vector<1x8x8xf32>
    %33 = arith.subf %28, %32 : vector<1x8x8xf32>
    %34 = math.exp %33 : vector<1x8x8xf32>
    %cst_34 = arith.constant 0.000000e+00 : f32
    %35 = vector.broadcast %cst_34 : f32 to vector<1x8x8xf32>
    %36 = arith.select %26, %34, %35 : vector<1x8x8xi1>, vector<1x8x8xf32>
    %cst_35 = arith.constant dense<0.000000e+00> : vector<1x8xf32>
    %37 = vector.multi_reduction <add>, %36, %cst_35 [2] : vector<1x8x8xf32> to vector<1x8xf32>
    %38 = vector.shape_cast %37 : vector<1x8xf32> to vector<1x8x1xf32>
    %cst_36 = arith.constant 1.17549435E-38 : f32
    %39 = vector.broadcast %cst_36 : f32 to vector<1x8x1xf32>
    %40 = arith.maximumf %38, %39 : vector<1x8x1xf32>
    %41 = tpu.reciprocal %40 : vector<1x8x1xf32> -> vector<1x8x1xf32>
    %42 = vector.broadcast %41 : vector<1x8x1xf32> to vector<1x8x8xf32>
    %43 = arith.mulf %36, %42 : vector<1x8x8xf32>
    %c0_37 = arith.constant 0 : index
    %c0_38 = arith.constant 0 : index
    %c0_39 = arith.constant 0 : index
    %44 = vector.load %arg12[%c0_37, %c0_38, %c0_39] : memref<1x8x8xf32, #tpu.memory_space<vmem>>, vector<1x8x8xf32>
    tpu.vector_store %arg12[%c0_37, %c0_38, %c0_39], %43 {strides = array<i32>} : memref<1x8x8xf32, #tpu.memory_space<vmem>>, vector<1x8x8xf32>,
    "tpu.trace_start"() <{level = 10 : i32, message = "bij,bjd->bid"}> : () -> ()
    %cst_40 = arith.constant dense<0.000000e+00> : vector<1x8x128xf32>
    %45 = tpu.matmul %43, %17, %cst_40 {dimension_numbers = #tpu.dot_dimension_numbers<[2], [1], [1], [2], [0, 0, 0, 1, 1, 2], [0], [0]>} : vector<1x8x8xf32>, vector<1x8x128xf32>, vector<1x8x128xf32> -> vector<1x8x128xf32>
    "tpu.trace_stop"() : () -> ()
    %c0_41 = arith.constant 0 : index
    %c0_42 = arith.constant 0 : index
    %c0_43 = arith.constant 0 : index
    %46 = vector.load %arg13[%c0_41, %c0_42, %c0_43] : memref<1x8x128xf32, #tpu.memory_space<vmem>>, vector<1x8x128xf32>
    tpu.vector_store %arg13[%c0_41, %c0_42, %c0_43], %45 {strides = array<i32>} : memref<1x8x128xf32, #tpu.memory_space<vmem>>, vector<1x8x128xf32>,
    return
  }
  func.func @transform_0(%arg0: i32) -> (i32, i32, i32) {
    %c0_i32 = arith.constant 0 : i32
    %c0_i32_0 = arith.constant 0 : i32
    %c0_i32_1 = arith.constant 0 : i32
    return %arg0, %c0_i32, %c0_i32_0 : i32, i32, i32
  }
  func.func @transform_1(%arg0: i32) -> (i32, i32, i32) {
    %c0_i32 = arith.constant 0 : i32
    %c0_i32_0 = arith.constant 0 : i32
    %c0_i32_1 = arith.constant 0 : i32
    return %arg0, %c0_i32, %c0_i32_0 : i32, i32, i32
  }
  func.func @transform_2(%arg0: i32) -> (i32, i32, i32) {
    %c0_i32 = arith.constant 0 : i32
    %c0_i32_0 = arith.constant 0 : i32
    %c0_i32_1 = arith.constant 0 : i32
    return %arg0, %c0_i32, %c0_i32_0 : i32, i32, i32
  }
  func.func @transform_3(%arg0: i32) -> (i32, i32) {
    %c0_i32 = arith.constant 0 : i32
    %c0_i32_0 = arith.constant 0 : i32
    %c0_i32_1 = arith.constant 0 : i32
    return %c0_i32, %c0_i32_0 : i32, i32
  }
  func.func @transform_4(%arg0: i32) -> (i32, i32) {
    %c0_i32 = arith.constant 0 : i32
    %c0_i32_0 = arith.constant 0 : i32
    %c0_i32_1 = arith.constant 0 : i32
    return %c0_i32, %c0_i32_0 : i32, i32
  }
  func.func @transform_5(%arg0: i32) -> (i32, i32) {
    %c0_i32 = arith.constant 0 : i32
    %c0_i32_0 = arith.constant 0 : i32
    %c0_i32_1 = arith.constant 0 : i32
    return %c0_i32, %c0_i32_0 : i32, i32
  }
  func.func @transform_6(%arg0: i32) -> (i32, i32) {
    %c0_i32 = arith.constant 0 : i32
    %c0_i32_0 = arith.constant 0 : i32
    %c0_i32_1 = arith.constant 0 : i32
    return %c0_i32, %c0_i32_0 : i32, i32
  }
  func.func @transform_7(%arg0: i32) -> (i32, i32, i32) {
    %c0_i32 = arith.constant 0 : i32
    %c0_i32_0 = arith.constant 0 : i32
    %c0_i32_1 = arith.constant 0 : i32
    return %arg0, %c0_i32, %c0_i32_0 : i32, i32, i32
  }
  func.func @transform_8(%arg0: i32) -> (i32, i32, i32) {
    %c0_i32 = arith.constant 0 : i32
    %c0_i32_0 = arith.constant 0 : i32
    %c0_i32_1 = arith.constant 0 : i32
    return %arg0, %c0_i32, %c0_i32_0 : i32, i32, i32
  }
  func.func @transform_9(%arg0: i32) -> (i32, i32, i32) {
    %c0_i32 = arith.constant 0 : i32
    %c0_i32_0 = arith.constant 0 : i32
    %c0_i32_1 = arith.constant 0 : i32
    return %arg0, %c0_i32, %c0_i32_0 : i32, i32, i32
  }
  func.func @transform_10(%arg0: i32) -> (i32, i32, i32) {
    %c0_i32 = arith.constant 0 : i32
    %c0_i32_0 = arith.constant 0 : i32
    %c0_i32_1 = arith.constant 0 : i32
    return %arg0, %c0_i32, %c0_i32_0 : i32, i32, i32
  }
  func.func @transform_11(%arg0: i32) -> (i32, i32, i32) {
    %c0_i32 = arith.constant 0 : i32
    %c0_i32_0 = arith.constant 0 : i32
    %c0_i32_1 = arith.constant 0 : i32
    return %arg0, %c0_i32, %c0_i32_0 : i32, i32, i32
  }
  func.func @transform_12(%arg0: i32) -> (i32, i32, i32) {
    %c0_i32 = arith.constant 0 : i32
    %c0_i32_0 = arith.constant 0 : i32
    %c0_i32_1 = arith.constant 0 : i32
    return %arg0, %c0_i32, %c0_i32_0 : i32, i32, i32
  }
}

</mosaic_0001>

<llo_original>
// kernel: single_head_attention.1
$region0: #{single_head_attention.1}
  #allocation0 [shape = 'u32[]', space=smem, size = 0x4, offset = 0x4, fixed_abs, tag = 'smem constant byte address 0x4 - core index']
  #allocation1 [shape = 'u32[144,128]{1,0:T(1,128)}', space=vmem, size = 0x12000, scoped, tag = 'internal scratch']
  %s0 = inlined_call_operand.vmem [shape: f32[2,8,16], index: 0, kind: input, shape index: {}]
  %s1 = inlined_call_operand.vmem [shape: f32[2,8,16], index: 1, kind: input, shape index: {}]
  %s2 = inlined_call_operand.vmem [shape: f32[2,8,8], index: 2, kind: input, shape index: {}]
  %s3 = inlined_call_operand.vmem [shape: f32[16,128], index: 3, kind: input, shape index: {}]
  %s4 = inlined_call_operand.vmem [shape: f32[16,256], index: 4, kind: input, shape index: {}]
  %s5 = inlined_call_operand.vmem [shape: f32[1,128], index: 5, kind: input, shape index: {}]
  %s6 = inlined_call_operand.vmem [shape: f32[1,256], index: 6, kind: input, shape index: {}]
  %s7 = inlined_call_operand.hbm [shape: f32[2,8,128], index: 7, kind: output, shape index: {0}]
  %s8 = inlined_call_operand.hbm [shape: f32[2,8,128], index: 8, kind: output, shape index: {1}]
  %s9 = inlined_call_operand.hbm [shape: f32[2,8,128], index: 9, kind: output, shape index: {2}]
  %s10 = inlined_call_operand.hbm [shape: f32[2,8,8], index: 10, kind: output, shape index: {3}]
  %s11 = inlined_call_operand.hbm [shape: f32[2,8,8], index: 11, kind: output, shape index: {4}]
  %s12 = inlined_call_operand.hbm [shape: f32[2,8,128], index: 12, kind: output, shape index: {5}]
  %13 = xla_tuple %s7, %s8, %s9, %s10, %s11, %s12
  %s14 = sld [smem:[#allocation0]]
  $region101: #{single_head_attention.1} parent=0
    _
  %s16 = ssub.s32 1, %s14
  %s17 = scalar_select 0, %s16, %s14
  $region1: #{single_head_attention.1} parent=0
    #allocation2 [shape = 'u8[8192]{0}', space=vmem, size = 0x2000, scoped, tag = 'output window, operand 0']
    #allocation3 [shape = 's32[2]{0}', space=sflag, size = 0x8, scoped, tag = 'scoped memory for single_head_attention.1']
    #allocation4 [shape = 'u8[8192]{0}', space=vmem, size = 0x2000, scoped, tag = 'output window, operand 1']
    #allocation5 [shape = 's32[2]{0}', space=sflag, size = 0x8, scoped, tag = 'scoped memory for single_head_attention.1']
    #allocation6 [shape = 'u8[8192]{0}', space=vmem, size = 0x2000, scoped, tag = 'output window, operand 2']
    #allocation7 [shape = 'u8[8192]{0}', space=vmem, size = 0x2000, scoped, tag = 'output window, operand 3']
    #allocation8 [shape = 's32[2]{0}', space=sflag, size = 0x8, scoped, tag = 'scoped memory for single_head_attention.1']
    #allocation9 [shape = 'u8[8192]{0}', space=vmem, size = 0x2000, scoped, tag = 'output window, operand 4']
    #allocation10 [shape = 'u8[8192]{0}', space=vmem, size = 0x2000, scoped, tag = 'output window, operand 5']
    #allocation11 [shape = 's32[2]{0}', space=sflag, size = 0x8, scoped, tag = 'scoped memory for single_head_attention.1']
    %18 = vsyncpa [#allocation3], 0
    %s19 = scalar_lea.sflag [#allocation3], 1
    %20 = vsyncpa %s19, 0
    %21 = vsyncpa [#allocation5], 0
    %s22 = scalar_lea.sflag [#allocation5], 1
    %23 = vsyncpa %s22, 0
    %24 = vsyncpa [#allocation8], 0
    %s25 = scalar_lea.sflag [#allocation8], 1
    %26 = vsyncpa %s25, 0
    %27 = vsyncpa [#allocation11], 0
    %s28 = scalar_lea.sflag [#allocation11], 1
    %29 = vsyncpa %s28, 0
    loop: start=0, step=1, limit=4
    $region2: #{single_head_attention.1} parent=1 // loop_pre_header
      _
    $region3: #{single_head_attention.1} parent=1 // loop_header
      %s31 = sphi 0, %s35
      %p32 = scmp.ge.s32.totalorder %s31, 4
      %s41 = sphi 0, %s43
      %s44 = sphi 0, %s41
      %s45 = sphi 0, %s44
      %s61 = sphi 0, %s45
      %s67 = sphi 0, %s69
      %s70 = sphi 0, %s67
      %s71 = sphi 0, %s70
      %s87 = sphi 0, %s71
      %s93 = sphi 0, %s95
      %s96 = sphi 0, %s93
      %s97 = sphi 0, %s96
      %s113 = sphi 0, %s97
      %s117 = sphi 0, %s117
      %s119 = sphi 0, %s117
      %s120 = sphi 0, %s119
      %s134 = sphi 0, %s120
      %s138 = sphi 0, %s138
      %s140 = sphi 0, %s138
      %s141 = sphi 0, %s140
      %s155 = sphi 0, %s141
      %s159 = sphi 0, %s159
      %s161 = sphi 0, %s159
      %s162 = sphi 0, %s161
      %s176 = sphi 0, %s162
      %s180 = sphi 0, %s180
      %s182 = sphi 0, %s180
      %s183 = sphi 0, %s182
      %s197 = sphi 0, %s183
      %s203 = sphi 0, %s205
      %s206 = sphi 0, %s203
      %s207 = sphi 0, %s206
      %s223 = sphi 0, %s207
      %s229 = sphi 0, %s231
      %s232 = sphi 0, %s229
      %s233 = sphi 0, %s232
      %s249 = sphi 0, %s233
      %s255 = sphi 0, %s257
      %s258 = sphi 0, %s255
      %s259 = sphi 0, %s258
      %s275 = sphi 0, %s259
      %s281 = sphi 0, %s283
      %s284 = sphi 0, %s281
      %s285 = sphi 0, %s284
      %s301 = sphi 0, %s285
      %s307 = sphi 0, %s309
      %s310 = sphi 0, %s307
      %s311 = sphi 0, %s310
      %s327 = sphi 0, %s311
      %s333 = sphi 0, %s335
      %s336 = sphi 0, %s333
      %s337 = sphi 0, %s336
      %s353 = sphi 0, %s337
    $region4: #{single_head_attention.1} parent=1 // loop_header_branch
      %34 = sbr.rel (%p32) target = $region8
    $region5: #{single_head_attention.1} parent=1 // loop_body
      %s36 = ssub.s32 %s31, 1
      %s37 = ssub.s32 %s31, 2
      %s38 = sadd.s32 %s31, 1
      %s39 = ssub.s32 %s31, %s38
      %p40 = scmp.eq.s32.totalorder %s39, 0
      %s42 = sadd.s32 %s41, 1
      %s43 = scalar_select %p40, %s41, %s42
      %p46 = pneg %p40
      %p47 = scmp.eq.s32.totalorder %s31, 1
      %p48 = por %p46, %p47
      %p49 = scmp.ne.s32.totalorder %s41, %s44
      %p50 = scmp.eq.s32.totalorder %s31, 0
      %p51 = por %p49, %p50
      %p52 = scmp.ne.s32.totalorder %s41, %s44
      %p53 = scmp.eq.s32.totalorder %s36, 1
      %p54 = por %p52, %p53
      %p55 = scmp.ne.s32.totalorder %s44, %s45
      %p56 = scmp.eq.s32.totalorder %s36, 0
      %p57 = por %p55, %p56
      %p58 = scmp.ne.s32.totalorder %s44, %s45
      %p59 = scmp.eq.s32.totalorder %s37, 1
      %p60 = por %p58, %p59
      %p62 = scmp.ne.s32.totalorder %s45, %s61
      %p63 = scmp.eq.s32.totalorder %s37, 0
      %p64 = por %p62, %p63
      %s65 = ssub.s32 %s31, %s38
      %p66 = scmp.eq.s32.totalorder %s65, 0
      %s68 = sadd.s32 %s67, 1
      %s69 = scalar_select %p66, %s67, %s68
      %p72 = pneg %p66
      %p73 = scmp.eq.s32.totalorder %s31, 1
      %p74 = por %p72, %p73
      %p75 = scmp.ne.s32.totalorder %s67, %s70
      %p76 = scmp.eq.s32.totalorder %s31, 0
      %p77 = por %p75, %p76
      %p78 = scmp.ne.s32.totalorder %s67, %s70
      %p79 = scmp.eq.s32.totalorder %s36, 1
      %p80 = por %p78, %p79
      %p81 = scmp.ne.s32.totalorder %s70, %s71
      %p82 = scmp.eq.s32.totalorder %s36, 0
      %p83 = por %p81, %p82
      %p84 = scmp.ne.s32.totalorder %s70, %s71
      %p85 = scmp.eq.s32.totalorder %s37, 1
      %p86 = por %p84, %p85
      %p88 = scmp.ne.s32.totalorder %s71, %s87
      %p89 = scmp.eq.s32.totalorder %s37, 0
      %p90 = por %p88, %p89
      %s91 = ssub.s32 %s31, %s38
      %p92 = scmp.eq.s32.totalorder %s91, 0
      %s94 = sadd.s32 %s93, 1
      %s95 = scalar_select %p92, %s93, %s94
      %p98 = pneg %p92
      %p99 = scmp.eq.s32.totalorder %s31, 1
      %p100 = por %p98, %p99
      %p101 = scmp.ne.s32.totalorder %s93, %s96
      %p102 = scmp.eq.s32.totalorder %s31, 0
      %p103 = por %p101, %p102
      %p104 = scmp.ne.s32.totalorder %s93, %s96
      %p105 = scmp.eq.s32.totalorder %s36, 1
      %p106 = por %p104, %p105
      %p107 = scmp.ne.s32.totalorder %s96, %s97
      %p108 = scmp.eq.s32.totalorder %s36, 0
      %p109 = por %p107, %p108
      %p110 = scmp.ne.s32.totalorder %s96, %s97
      %p111 = scmp.eq.s32.totalorder %s37, 1
      %p112 = por %p110, %p111
      %p114 = scmp.ne.s32.totalorder %s97, %s113
      %p115 = scmp.eq.s32.totalorder %s37, 0
      %p116 = por %p114, %p115
      %s118 = sadd.s32 %s117, 1
      %p121 = scmp.eq.s32.totalorder %s31, 1
      %p122 = scmp.ne.s32.totalorder %s117, %s119
      %p123 = scmp.eq.s32.totalorder %s31, 0
      %p124 = por %p122, %p123
      %p125 = scmp.ne.s32.totalorder %s117, %s119
      %p126 = scmp.eq.s32.totalorder %s36, 1
      %p127 = por %p125, %p126
      %p128 = scmp.ne.s32.totalorder %s119, %s120
      %p129 = scmp.eq.s32.totalorder %s36, 0
      %p130 = por %p128, %p129
      %p131 = scmp.ne.s32.totalorder %s119, %s120
      %p132 = scmp.eq.s32.totalorder %s37, 1
      %p133 = por %p131, %p132
      %p135 = scmp.ne.s32.totalorder %s120, %s134
      %p136 = scmp.eq.s32.totalorder %s37, 0
      %p137 = por %p135, %p136
      %s139 = sadd.s32 %s138, 1
      %p142 = scmp.eq.s32.totalorder %s31, 1
      %p143 = scmp.ne.s32.totalorder %s138, %s140
      %p144 = scmp.eq.s32.totalorder %s31, 0
      %p145 = por %p143, %p144
      %p146 = scmp.ne.s32.totalorder %s138, %s140
      %p147 = scmp.eq.s32.totalorder %s36, 1
      %p148 = por %p146, %p147
      %p149 = scmp.ne.s32.totalorder %s140, %s141
      %p150 = scmp.eq.s32.totalorder %s36, 0
      %p151 = por %p149, %p150
      %p152 = scmp.ne.s32.totalorder %s140, %s141
      %p153 = scmp.eq.s32.totalorder %s37, 1
      %p154 = por %p152, %p153
      %p156 = scmp.ne.s32.totalorder %s141, %s155
      %p157 = scmp.eq.s32.totalorder %s37, 0
      %p158 = por %p156, %p157
      %s160 = sadd.s32 %s159, 1
      %p163 = scmp.eq.s32.totalorder %s31, 1
      %p164 = scmp.ne.s32.totalorder %s159, %s161
      %p165 = scmp.eq.s32.totalorder %s31, 0
      %p166 = por %p164, %p165
      %p167 = scmp.ne.s32.totalorder %s159, %s161
      %p168 = scmp.eq.s32.totalorder %s36, 1
      %p169 = por %p167, %p168
      %p170 = scmp.ne.s32.totalorder %s161, %s162
      %p171 = scmp.eq.s32.totalorder %s36, 0
      %p172 = por %p170, %p171
      %p173 = scmp.ne.s32.totalorder %s161, %s162
      %p174 = scmp.eq.s32.totalorder %s37, 1
      %p175 = por %p173, %p174
      %p177 = scmp.ne.s32.totalorder %s162, %s176
      %p178 = scmp.eq.s32.totalorder %s37, 0
      %p179 = por %p177, %p178
      %s181 = sadd.s32 %s180, 1
      %p184 = scmp.eq.s32.totalorder %s31, 1
      %p185 = scmp.ne.s32.totalorder %s180, %s182
      %p186 = scmp.eq.s32.totalorder %s31, 0
      %p187 = por %p185, %p186
      %p188 = scmp.ne.s32.totalorder %s180, %s182
      %p189 = scmp.eq.s32.totalorder %s36, 1
      %p190 = por %p188, %p189
      %p191 = scmp.ne.s32.totalorder %s182, %s183
      %p192 = scmp.eq.s32.totalorder %s36, 0
      %p193 = por %p191, %p192
      %p194 = scmp.ne.s32.totalorder %s182, %s183
      %p195 = scmp.eq.s32.totalorder %s37, 1
      %p196 = por %p194, %p195
      %p198 = scmp.ne.s32.totalorder %s183, %s197
      %p199 = scmp.eq.s32.totalorder %s37, 0
      %p200 = por %p198, %p199
      %s201 = ssub.s32 %s31, %s38
      %p202 = scmp.eq.s32.totalorder %s201, 0
      %s204 = sadd.s32 %s203, 1
      %s205 = scalar_select %p202, %s203, %s204
      %p208 = pneg %p202
      %p209 = scmp.eq.s32.totalorder %s31, 1
      %p210 = por %p208, %p209
      %p211 = scmp.ne.s32.totalorder %s203, %s206
      %p212 = scmp.eq.s32.totalorder %s31, 0
      %p213 = por %p211, %p212
      %p214 = scmp.ne.s32.totalorder %s203, %s206
      %p215 = scmp.eq.s32.totalorder %s36, 1
      %p216 = por %p214, %p215
      %p217 = scmp.ne.s32.totalorder %s206, %s207
      %p218 = scmp.eq.s32.totalorder %s36, 0
      %p219 = por %p217, %p218
      %p220 = scmp.ne.s32.totalorder %s206, %s207
      %p221 = scmp.eq.s32.totalorder %s37, 1
      %p222 = por %p220, %p221
      %p224 = scmp.ne.s32.totalorder %s207, %s223
      %p225 = scmp.eq.s32.totalorder %s37, 0
      %p226 = por %p224, %p225
      %s227 = ssub.s32 %s31, %s38
      %p228 = scmp.eq.s32.totalorder %s227, 0
      %s230 = sadd.s32 %s229, 1
      %s231 = scalar_select %p228, %s229, %s230
      %p234 = pneg %p228
      %p235 = scmp.eq.s32.totalorder %s31, 1
      %p236 = por %p234, %p235
      %p237 = scmp.ne.s32.totalorder %s229, %s232
      %p238 = scmp.eq.s32.totalorder %s31, 0
      %p239 = por %p237, %p238
      %p240 = scmp.ne.s32.totalorder %s229, %s232
      %p241 = scmp.eq.s32.totalorder %s36, 1
      %p242 = por %p240, %p241
      %p243 = scmp.ne.s32.totalorder %s232, %s233
      %p244 = scmp.eq.s32.totalorder %s36, 0
      %p245 = por %p243, %p244
      %p246 = scmp.ne.s32.totalorder %s232, %s233
      %p247 = scmp.eq.s32.totalorder %s37, 1
      %p248 = por %p246, %p247
      %p250 = scmp.ne.s32.totalorder %s233, %s249
      %p251 = scmp.eq.s32.totalorder %s37, 0
      %p252 = por %p250, %p251
      %s253 = ssub.s32 %s31, %s38
      %p254 = scmp.eq.s32.totalorder %s253, 0
      %s256 = sadd.s32 %s255, 1
      %s257 = scalar_select %p254, %s255, %s256
      %p260 = pneg %p254
      %p261 = scmp.eq.s32.totalorder %s31, 1
      %p262 = por %p260, %p261
      %p263 = scmp.ne.s32.totalorder %s255, %s258
      %p264 = scmp.eq.s32.totalorder %s31, 0
      %p265 = por %p263, %p264
      %p266 = scmp.ne.s32.totalorder %s255, %s258
      %p267 = scmp.eq.s32.totalorder %s36, 1
      %p268 = por %p266, %p267
      %p269 = scmp.ne.s32.totalorder %s258, %s259
      %p270 = scmp.eq.s32.totalorder %s36, 0
      %p271 = por %p269, %p270
      %p272 = scmp.ne.s32.totalorder %s258, %s259
      %p273 = scmp.eq.s32.totalorder %s37, 1
      %p274 = por %p272, %p273
      %p276 = scmp.ne.s32.totalorder %s259, %s275
      %p277 = scmp.eq.s32.totalorder %s37, 0
      %p278 = por %p276, %p277
      %s279 = ssub.s32 %s31, %s38
      %p280 = scmp.eq.s32.totalorder %s279, 0
      %s282 = sadd.s32 %s281, 1
      %s283 = scalar_select %p280, %s281, %s282
      %p286 = pneg %p280
      %p287 = scmp.eq.s32.totalorder %s31, 1
      %p288 = por %p286, %p287
      %p289 = scmp.ne.s32.totalorder %s281, %s284
      %p290 = scmp.eq.s32.totalorder %s31, 0
      %p291 = por %p289, %p290
      %p292 = scmp.ne.s32.totalorder %s281, %s284
      %p293 = scmp.eq.s32.totalorder %s36, 1
      %p294 = por %p292, %p293
      %p295 = scmp.ne.s32.totalorder %s284, %s285
      %p296 = scmp.eq.s32.totalorder %s36, 0
      %p297 = por %p295, %p296
      %p298 = scmp.ne.s32.totalorder %s284, %s285
      %p299 = scmp.eq.s32.totalorder %s37, 1
      %p300 = por %p298, %p299
      %p302 = scmp.ne.s32.totalorder %s285, %s301
      %p303 = scmp.eq.s32.totalorder %s37, 0
      %p304 = por %p302, %p303
      %s305 = ssub.s32 %s31, %s38
      %p306 = scmp.eq.s32.totalorder %s305, 0
      %s308 = sadd.s32 %s307, 1
      %s309 = scalar_select %p306, %s307, %s308
      %p312 = pneg %p306
      %p313 = scmp.eq.s32.totalorder %s31, 1
      %p314 = por %p312, %p313
      %p315 = scmp.ne.s32.totalorder %s307, %s310
      %p316 = scmp.eq.s32.totalorder %s31, 0
      %p317 = por %p315, %p316
      %p318 = scmp.ne.s32.totalorder %s307, %s310
      %p319 = scmp.eq.s32.totalorder %s36, 1
      %p320 = por %p318, %p319
      %p321 = scmp.ne.s32.totalorder %s310, %s311
      %p322 = scmp.eq.s32.totalorder %s36, 0
      %p323 = por %p321, %p322
      %p324 = scmp.ne.s32.totalorder %s310, %s311
      %p325 = scmp.eq.s32.totalorder %s37, 1
      %p326 = por %p324, %p325
      %p328 = scmp.ne.s32.totalorder %s311, %s327
      %p329 = scmp.eq.s32.totalorder %s37, 0
      %p330 = por %p328, %p329
      %s331 = ssub.s32 %s31, %s38
      %p332 = scmp.eq.s32.totalorder %s331, 0
      %s334 = sadd.s32 %s333, 1
      %s335 = scalar_select %p332, %s333, %s334
      %p338 = pneg %p332
      %p339 = scmp.eq.s32.totalorder %s31, 1
      %p340 = por %p338, %p339
      %p341 = scmp.ne.s32.totalorder %s333, %s336
      %p342 = scmp.eq.s32.totalorder %s31, 0
      %p343 = por %p341, %p342
      %p344 = scmp.ne.s32.totalorder %s333, %s336
      %p345 = scmp.eq.s32.totalorder %s36, 1
      %p346 = por %p344, %p345
      %p347 = scmp.ne.s32.totalorder %s336, %s337
      %p348 = scmp.eq.s32.totalorder %s36, 0
      %p349 = por %p347, %p348
      %p350 = scmp.ne.s32.totalorder %s336, %s337
      %p351 = scmp.eq.s32.totalorder %s37, 1
      %p352 = por %p350, %p351
      %p354 = scmp.ne.s32.totalorder %s337, %s353
      %p355 = scmp.eq.s32.totalorder %s37, 0
      %p356 = por %p354, %p355
      %p357 = scmp.le.s32.totalorder 1, %s31
      %p358 = scmp.lt.s32.totalorder %s31, 3
      %p359 = pnand %p357, %p358
      %p360 = pneg %p359
      // Predicated region
      $region9: #{single_head_attention.1} parent=5 // pred_check
        _
      $region10: #{single_head_attention.1} parent=5 // pred_check_branch
        %362 = sbr.rel (%p359) target = $region12
      $region11: #{single_head_attention.1} parent=5 // pred_region
        %s363 = ssub.s32 %s31, 1
        // Predicated region
        $region13: #{single_head_attention.1} parent=11 // pred_check
          %p364 = pneg %p130
        $region14: #{single_head_attention.1} parent=11 // pred_check_branch
          %366 = sbr.rel (%p364) target = $region16
        $region15: #{single_head_attention.1} parent=11 // pred_region
          _
        $region16: #{single_head_attention.1} parent=11 // pred_fallthru
          _
        // Predicated region
        $region17: #{single_head_attention.1} parent=11 // pred_check
          %p367 = pneg %p151
        $region18: #{single_head_attention.1} parent=11 // pred_check_branch
          %369 = sbr.rel (%p367) target = $region20
        $region19: #{single_head_attention.1} parent=11 // pred_region
          _
        $region20: #{single_head_attention.1} parent=11 // pred_fallthru
          _
        // Predicated region
        $region21: #{single_head_attention.1} parent=11 // pred_check
          %p370 = pneg %p172
        $region22: #{single_head_attention.1} parent=11 // pred_check_branch
          %372 = sbr.rel (%p370) target = $region24
        $region23: #{single_head_attention.1} parent=11 // pred_region
          _
        $region24: #{single_head_attention.1} parent=11 // pred_fallthru
          _
        // Predicated region
        $region25: #{single_head_attention.1} parent=11 // pred_check
          %p373 = pneg %p193
        $region26: #{single_head_attention.1} parent=11 // pred_check_branch
          %375 = sbr.rel (%p373) target = $region28
        $region27: #{single_head_attention.1} parent=11 // pred_region
          _
        $region28: #{single_head_attention.1} parent=11 // pred_fallthru
          _
      $region12: #{single_head_attention.1} parent=5 // pred_fallthru
        _
      %p376 = scmp.lt.s32.totalorder %s31, 2
      // Predicated region
      $region29: #{single_head_attention.1} parent=5 // pred_check
        %p377 = pneg %p376
      $region30: #{single_head_attention.1} parent=5 // pred_check_branch
        %379 = sbr.rel (%p377) target = $region32
      $region31: #{single_head_attention.1} parent=5 // pred_region
        // Predicated region
        $region33: #{single_head_attention.1} parent=31 // pred_check
          %p380 = pneg %p51
        $region34: #{single_head_attention.1} parent=31 // pred_check_branch
          %382 = sbr.rel (%p380) target = $region36
        $region35: #{single_head_attention.1} parent=31 // pred_region
          %p383 = scmp.lt.s32.totalorder %s31, 1
          %s384 = scalar_select %p383, %s31, 1
          %s385 = smul.addr %s384, 8
          %s386 = scalar_lea.vmem %s0, %s385
        $region36: #{single_head_attention.1} parent=31 // pred_fallthru
          _
        // Predicated region
        $region37: #{single_head_attention.1} parent=31 // pred_check
          %p387 = pneg %p77
        $region38: #{single_head_attention.1} parent=31 // pred_check_branch
          %389 = sbr.rel (%p387) target = $region40
        $region39: #{single_head_attention.1} parent=31 // pred_region
          %p390 = scmp.lt.s32.totalorder %s31, 1
          %s391 = scalar_select %p390, %s31, 1
          %s392 = smul.addr %s391, 8
          %s393 = scalar_lea.vmem %s1, %s392
        $region40: #{single_head_attention.1} parent=31 // pred_fallthru
          _
        // Predicated region
        $region41: #{single_head_attention.1} parent=31 // pred_check
          %p394 = pneg %p103
        $region42: #{single_head_attention.1} parent=31 // pred_check_branch
          %396 = sbr.rel (%p394) target = $region44
        $region43: #{single_head_attention.1} parent=31 // pred_region
          %p397 = scmp.lt.s32.totalorder %s31, 1
          %s398 = scalar_select %p397, %s31, 1
          %s399 = smul.addr %s398, 8
          %s400 = scalar_lea.vmem %s2, %s399
        $region44: #{single_head_attention.1} parent=31 // pred_fallthru
          _
      $region32: #{single_head_attention.1} parent=5 // pred_fallthru
        _
      %p401 = scmp.le.s32.totalorder 1, %s31
      %p402 = scmp.lt.s32.totalorder %s31, 3
      %p403 = pnand %p401, %p402
      %p404 = pneg %p403
      // Predicated region
      $region45: #{single_head_attention.1} parent=5 // pred_check
        _
      $region46: #{single_head_attention.1} parent=5 // pred_check_branch
        %406 = sbr.rel (%p403) target = $region48
      $region47: #{single_head_attention.1} parent=5 // pred_region
        %s407 = ssub.s32 %s31, 1
        %p408 = scmp.lt.s32.totalorder %s36, 1
        %s409 = scalar_select %p408, %s36, 1
        %s410 = smul.addr %s409, 8
        %s411 = scalar_lea.vmem %s0, %s410
        %p412 = pneg %p57
        %p413 = pneg %p54
        %p414 = scmp.lt.s32.totalorder %s36, 1
        %s415 = scalar_select %p414, %s36, 1
        %s416 = smul.addr %s415, 8
        %s417 = scalar_lea.vmem %s1, %s416
        %p418 = pneg %p83
        %p419 = pneg %p80
        %p420 = scmp.lt.s32.totalorder %s36, 1
        %s421 = scalar_select %p420, %s36, 1
        %s422 = smul.addr %s421, 8
        %s423 = scalar_lea.vmem %s2, %s422
        %p424 = pneg %p109
        %p425 = pneg %p106
        %p426 = pneg %p130
        %p427 = pneg %p127
        %p428 = pneg %p151
        %p429 = pneg %p148
        %p430 = pneg %p172
        %p431 = pneg %p169
        %p432 = pneg %p193
        %p433 = pneg %p190
        %p434 = pneg %p219
        %p435 = pneg %p216
        %s436 = sand.u32 %s206, 1
        %s437 = scalar_lea.sflag [#allocation3], %s436
        %s438 = sand.u32 %s206, 1
        %s439 = smul.addr %s438, 8
        %s440 = scalar_lea.vmem [#allocation2], %s439
        %p441 = pneg %p245
        %p442 = pneg %p242
        %s443 = sand.u32 %s36, 1
        %s444 = scalar_lea.sflag [#allocation5], %s443
        %s445 = sand.u32 %s232, 1
        %s446 = smul.addr %s445, 8
        %s447 = scalar_lea.vmem [#allocation4], %s446
        %p448 = pneg %p271
        %p449 = pneg %p268
        %s450 = sand.u32 %s36, 1
        %s451 = scalar_lea.sflag [#allocation5], %s450
        %s452 = sand.u32 %s258, 1
        %s453 = smul.addr %s452, 8
        %s454 = scalar_lea.vmem [#allocation6], %s453
        %p455 = pneg %p297
        %p456 = pneg %p294
        %s457 = sand.u32 %s36, 1
        %s458 = scalar_lea.sflag [#allocation8], %s457
        %s459 = sand.u32 %s284, 1
        %s460 = smul.addr %s459, 8
        %s461 = scalar_lea.vmem [#allocation7], %s460
        %p462 = pneg %p323
        %p463 = pneg %p320
        %s464 = sand.u32 %s36, 1
        %s465 = scalar_lea.sflag [#allocation8], %s464
        %s466 = sand.u32 %s310, 1
        %s467 = smul.addr %s466, 8
        %s468 = scalar_lea.vmem [#allocation9], %s467
        %p469 = pneg %p349
        %p470 = pneg %p346
        %s471 = sand.u32 %s336, 1
        %s472 = scalar_lea.sflag [#allocation11], %s471
        %s473 = sand.u32 %s336, 1
        %s474 = smul.addr %s473, 8
        %s475 = scalar_lea.vmem [#allocation10], %s474
        %p476 = scmp.lt.s32.totalorder %s36, 1
        %s477 = scalar_select %p476, %s36, 1
        %s478 = smul.addr %s477, 8
        %s479 = scalar_lea.vmem %s0, %s478
        %p480 = scmp.lt.s32.totalorder %s36, 1
        %s481 = scalar_select %p480, %s36, 1
        %s482 = smul.addr %s481, 8
        %s483 = scalar_lea.vmem %s1, %s482
        %p484 = scmp.lt.s32.totalorder %s36, 1
        %s485 = scalar_select %p484, %s36, 1
        %s486 = smul.addr %s485, 8
        %s487 = scalar_lea.vmem %s2, %s486
        %v488 = vld [vmem:[%s3] sm:$0xff]
        %v489 = vld [vmem:[%s3 + $0x8] sm:$0xff]
        %v490 = vld [vmem:[%s4] sm:$0xff]
        %v491 = vld [vmem:[%s4 + $0x8] sm:$0xff]
        %v492 = vld [vmem:[%s4 + $0x10] sm:$0xff]
        %v493 = vld [vmem:[%s4 + $0x18] sm:$0xff]
        %v494 = vld [vmem:[%s5] sm:$0x1]
        %v495 = vld [vmem:[%s6] sm:$0x3]
        %v496 = vld [vmem:[%s479] sm:$0xff]
        %v497 = vld [vmem:[%s483] sm:$0xff]
        %v499 = vlaneseq
        %v500 = vshrl.u32 %v499, 7
        %v501 = vsub.s32 0, %v500
        %v502 = vrot.slane %v494, %v501
        %vm504 = vcmask 130048
        %v506 = vsel %vm504, %v496, 0
        %508 = vmatprep.subr.mxu0 0.0
        %509 = vmatpush1.msra.mxu0 0.0
        %510 = vmatprep.subr.mxu0 0.0
        %511 = vmatpush1.msra.mxu0 0.0
        %512 = vmatprep.subr.mxu0 0.0
        %513 = vmatpush1.msra.mxu0 0.0
        %514 = vmatprep.subr.mxu0 0.0
        %515 = vmatpush1.msra.mxu0 0.0
        %516 = vmatprep.subr.mxu0 0.0
        %517 = vmatpush1.msra.mxu0 0.0
        %518 = vmatprep.subr.mxu0 0.0
        %519 = vmatpush1.msra.mxu0 0.0
        %520 = vmatprep.subr.mxu0 0.0
        %521 = vmatpush1.msra.mxu0 0.0
        %522 = vmatprep.subr.mxu0 0.0
        %523 = vmatpush1.msra.mxu0 0.0
        %524 = vmatprep.subr.mxu0 0.0
        %525 = vmatpush1.msra.mxu0 0.0
        %526 = vmatprep.subr.mxu0 0.0
        %527 = vmatpush1.msra.mxu0 0.0
        %528 = vmatprep.subr.mxu0 0.0
        %529 = vmatpush1.msra.mxu0 0.0
        %530 = vmatprep.subr.mxu0 0.0
        %531 = vmatpush1.msra.mxu0 0.0
        %532 = vmatprep.subr.mxu0 0.0
        %533 = vmatpush1.msra.mxu0 0.0
        %534 = vmatprep.subr.mxu0 0.0
        %535 = vmatpush1.msra.mxu0 0.0
        %536 = vmatprep.subr.mxu0 0.0
        %537 = vmatpush1.msra.mxu0 %v489
        %538 = vmatprep.subr.mxu0 0.0
        %539 = vmatpush1.msra.mxu0 %v488
        %540 = vmatprep.subr.mxu0 0.0
        %541 = vmatpush2.msra.mxu0 0.0
        %542 = vmatprep.subr.mxu0 0.0
        %543 = vmatpush2.msra.mxu0 0.0
        %544 = vmatprep.subr.mxu0 0.0
        %545 = vmatpush2.msra.mxu0 0.0
        %546 = vmatprep.subr.mxu0 0.0
        %547 = vmatpush2.msra.mxu0 0.0
        %548 = vmatprep.subr.mxu0 0.0
        %549 = vmatpush2.msra.mxu0 0.0
        %550 = vmatprep.subr.mxu0 0.0
        %551 = vmatpush2.msra.mxu0 0.0
        %552 = vmatprep.subr.mxu0 0.0
        %553 = vmatpush2.msra.mxu0 0.0
        %554 = vmatprep.subr.mxu0 0.0
        %555 = vmatpush2.msra.mxu0 0.0
        %556 = vmatprep.subr.mxu0 0.0
        %557 = vmatpush2.msra.mxu0 0.0
        %558 = vmatprep.subr.mxu0 0.0
        %559 = vmatpush2.msra.mxu0 0.0
        %560 = vmatprep.subr.mxu0 0.0
        %561 = vmatpush2.msra.mxu0 0.0
        %562 = vmatprep.subr.mxu0 0.0
        %563 = vmatpush2.msra.mxu0 0.0
        %564 = vmatprep.subr.mxu0 0.0
        %565 = vmatpush2.msra.mxu0 0.0
        %566 = vmatprep.subr.mxu0 0.0
        %567 = vmatpush2.msra.mxu0 0.0
        %568 = vmatprep.subr.mxu0 0.0
        %569 = vmatpush2.msra.mxu0 0.0
        %570 = vmatprep.subr.mxu0 0.0
        %571 = vmatpush2.msra.mxu0 0.0
        %572 = vmatprep.mubr.f32.mxu0 0.0
        %573 = vmatmul.mubr.f32.gmra.mxu0 %v506
        %v574 = vpop.f32.mrf.mxu0
        %v575 = vadd.f32 %v502, %v574
        %v576 = vpop.f32.mrf.mxu0
        %577 = vdwg.mxu0
        %v579 = vlaneseq
        %v580 = vshrl.u32 %v579, 7
        %v581 = vsub.s32 0, %v580
        %v582 = vrot.slane %v495, %v581
        %v583 = vlaneseq
        %v584 = vshrl.u32 %v583, 7
        %v585 = vsub.s32 1, %v584
        %v586 = vrot.slane %v495, %v585
        %v590 = vsel %vm504, %v497, 0
        %592 = vmatprep.subr.mxu0 0.0
        %593 = vmatpush1.msra.mxu0 0.0
        %594 = vmatprep.subr.mxu0 0.0
        %595 = vmatpush1.msra.mxu0 0.0
        %596 = vmatprep.subr.mxu0 0.0
        %597 = vmatpush1.msra.mxu0 0.0
        %598 = vmatprep.subr.mxu0 0.0
        %599 = vmatpush1.msra.mxu0 0.0
        %600 = vmatprep.subr.mxu0 0.0
        %601 = vmatpush1.msra.mxu0 0.0
        %602 = vmatprep.subr.mxu0 0.0
        %603 = vmatpush1.msra.mxu0 0.0
        %604 = vmatprep.subr.mxu0 0.0
        %605 = vmatpush1.msra.mxu0 0.0
        %606 = vmatprep.subr.mxu0 0.0
        %607 = vmatpush1.msra.mxu0 0.0
        %608 = vmatprep.subr.mxu0 0.0
        %609 = vmatpush1.msra.mxu0 0.0
        %610 = vmatprep.subr.mxu0 0.0
        %611 = vmatpush1.msra.mxu0 0.0
        %612 = vmatprep.subr.mxu0 0.0
        %613 = vmatpush1.msra.mxu0 0.0
        %614 = vmatprep.subr.mxu0 0.0
        %615 = vmatpush1.msra.mxu0 0.0
        %616 = vmatprep.subr.mxu0 0.0
        %617 = vmatpush1.msra.mxu0 0.0
        %618 = vmatprep.subr.mxu0 0.0
        %619 = vmatpush1.msra.mxu0 0.0
        %620 = vmatprep.subr.mxu0 %v493
        %621 = vmatpush1.msra.mxu0 %v492
        %622 = vmatprep.subr.mxu0 %v491
        %623 = vmatpush1.msra.mxu0 %v490
        %624 = vmatprep.subr.mxu0 0.0
        %625 = vmatpush2.msra.mxu0 0.0
        %626 = vmatprep.subr.mxu0 0.0
        %627 = vmatpush2.msra.mxu0 0.0
        %628 = vmatprep.subr.mxu0 0.0
        %629 = vmatpush2.msra.mxu0 0.0
        %630 = vmatprep.subr.mxu0 0.0
        %631 = vmatpush2.msra.mxu0 0.0
        %632 = vmatprep.subr.mxu0 0.0
        %633 = vmatpush2.msra.mxu0 0.0
        %634 = vmatprep.subr.mxu0 0.0
        %635 = vmatpush2.msra.mxu0 0.0
        %636 = vmatprep.subr.mxu0 0.0
        %637 = vmatpush2.msra.mxu0 0.0
        %638 = vmatprep.subr.mxu0 0.0
        %639 = vmatpush2.msra.mxu0 0.0
        %640 = vmatprep.subr.mxu0 0.0
        %641 = vmatpush2.msra.mxu0 0.0
        %642 = vmatprep.subr.mxu0 0.0
        %643 = vmatpush2.msra.mxu0 0.0
        %644 = vmatprep.subr.mxu0 0.0
        %645 = vmatpush2.msra.mxu0 0.0
        %646 = vmatprep.subr.mxu0 0.0
        %647 = vmatpush2.msra.mxu0 0.0
        %648 = vmatprep.subr.mxu0 0.0
        %649 = vmatpush2.msra.mxu0 0.0
        %650 = vmatprep.subr.mxu0 0.0
        %651 = vmatpush2.msra.mxu0 0.0
        %652 = vmatprep.subr.mxu0 0.0
        %653 = vmatpush2.msra.mxu0 0.0
        %654 = vmatprep.subr.mxu0 0.0
        %655 = vmatpush2.msra.mxu0 0.0
        %656 = vmatprep.mubr.f32.mxu0 0.0
        %657 = vmatmul.mubr.f32.gmra.mxu0 %v590
        %v658 = vpop.f32.mrf.mxu0
        %v659 = vadd.f32 %v582, %v658
        %v660 = vpop.f32.mrf.mxu0
        %v661 = vadd.f32 %v586, %v660
        %662 = vdwg.mxu0
        %663 = vst [vmem:[%s440] sm:$0xff] %v575
        %664 = vst [vmem:[%s447] sm:$0xff] %v659
        %665 = vst [vmem:[%s454] sm:$0xff] %v661
        %v666 = vmul.f32 %v575, 0.17677669
        %667 = vmatprep.subr.mxu0 0.0
        %668 = vmatpush1.xpose.msra.mxu0 0.0
        %669 = vmatprep.subr.mxu0 0.0
        %670 = vmatpush1.xpose.msra.mxu0 0.0
        %671 = vmatprep.subr.mxu0 0.0
        %672 = vmatpush1.xpose.msra.mxu0 0.0
        %673 = vmatprep.subr.mxu0 0.0
        %674 = vmatpush1.xpose.msra.mxu0 0.0
        %675 = vmatprep.subr.mxu0 0.0
        %676 = vmatpush1.xpose.msra.mxu0 0.0
        %677 = vmatprep.subr.mxu0 0.0
        %678 = vmatpush1.xpose.msra.mxu0 0.0
        %679 = vmatprep.subr.mxu0 0.0
        %680 = vmatpush1.xpose.msra.mxu0 0.0
        %681 = vmatprep.subr.mxu0 0.0
        %682 = vmatpush1.xpose.msra.mxu0 0.0
        %683 = vmatprep.subr.mxu0 0.0
        %684 = vmatpush1.xpose.msra.mxu0 0.0
        %685 = vmatprep.subr.mxu0 0.0
        %686 = vmatpush1.xpose.msra.mxu0 0.0
        %687 = vmatprep.subr.mxu0 0.0
        %688 = vmatpush1.xpose.msra.mxu0 0.0
        %689 = vmatprep.subr.mxu0 0.0
        %690 = vmatpush1.xpose.msra.mxu0 0.0
        %691 = vmatprep.subr.mxu0 0.0
        %692 = vmatpush1.xpose.msra.mxu0 0.0
        %693 = vmatprep.subr.mxu0 0.0
        %694 = vmatpush1.xpose.msra.mxu0 0.0
        %695 = vmatprep.subr.mxu0 0.0
        %696 = vmatpush1.xpose.msra.mxu0 0.0
        %697 = vmatprep.subr.mxu0 0.0
        %698 = vmatpush1.xpose.msra.mxu0 %v659
        %699 = vmatprep.subr.mxu0 0.0
        %700 = vmatpush2.xpose.msra.mxu0 0.0
        %701 = vmatprep.subr.mxu0 0.0
        %702 = vmatpush2.xpose.msra.mxu0 0.0
        %703 = vmatprep.subr.mxu0 0.0
        %704 = vmatpush2.xpose.msra.mxu0 0.0
        %705 = vmatprep.subr.mxu0 0.0
        %706 = vmatpush2.xpose.msra.mxu0 0.0
        %707 = vmatprep.subr.mxu0 0.0
        %708 = vmatpush2.xpose.msra.mxu0 0.0
        %709 = vmatprep.subr.mxu0 0.0
        %710 = vmatpush2.xpose.msra.mxu0 0.0
        %711 = vmatprep.subr.mxu0 0.0
        %712 = vmatpush2.xpose.msra.mxu0 0.0
        %713 = vmatprep.subr.mxu0 0.0
        %714 = vmatpush2.xpose.msra.mxu0 0.0
        %715 = vmatprep.subr.mxu0 0.0
        %716 = vmatpush2.xpose.msra.mxu0 0.0
        %717 = vmatprep.subr.mxu0 0.0
        %718 = vmatpush2.xpose.msra.mxu0 0.0
        %719 = vmatprep.subr.mxu0 0.0
        %720 = vmatpush2.xpose.msra.mxu0 0.0
        %721 = vmatprep.subr.mxu0 0.0
        %722 = vmatpush2.xpose.msra.mxu0 0.0
        %723 = vmatprep.subr.mxu0 0.0
        %724 = vmatpush2.xpose.msra.mxu0 0.0
        %725 = vmatprep.subr.mxu0 0.0
        %726 = vmatpush2.xpose.msra.mxu0 0.0
        %727 = vmatprep.subr.mxu0 0.0
        %728 = vmatpush2.xpose.msra.mxu0 0.0
        %729 = vmatprep.subr.mxu0 0.0
        %730 = vmatpush2.xpose.msra.mxu0 0.0
        %731 = vmatprep.mubr.f32.mxu0 0.0
        %732 = vmatmul.mubr.f32.gmra.mxu0 %v666
        %v733 = vpop.f32.mrf.mxu0
        %v734 = vadd.f32 0.0, %v733
        %v735 = vpop.f32.mrf.mxu0
        %736 = vdwg.mxu0
        %v737 = vld [vmem:[%s487] sm:$0xff]
        %vm738 = vcmp.ne.f32.partialorder %v737, 0.0
        %v739 = vsel %vm738, %v734, -3.4028235e+38
        %vm740 = vcmask 64512
        %741 = vst.msk [vmem:[%s461] sm:$0xff] %vm740, %v739
        %v742 = vsel %vm740, %v739, -inf
        %743 = vmax.xlane.f32.xlu0 %v742
        %v744 = vpop.xlane.xlu0 %743
        %v745 = vsub.f32 %v739, %v744
        %v746 = vmul.f32 %v745, 1.442695
        %v747 = vpow.pop %v746
        %v748 = vsel %vm738, %v747, 0.0
        %v749 = vsel %vm740, %v748, 0.0
        %750 = vadd.xlane.f32.xlu0 %v749
        %v751 = vpop.xlane.xlu0 %750
        %v752 = vmax.f32 %v751, 1.1754944e-38
        %v753 = vrcp.pop %v752
        %v754 = vmul.f32 %v748, %v753
        %755 = vst.msk [vmem:[%s468] sm:$0xff] %vm740, %v754
        %v757 = vsel %vm740, %v754, 0
        %759 = vmatprep.subr.mxu0 0.0
        %760 = vmatpush1.msra.mxu0 0.0
        %761 = vmatprep.subr.mxu0 0.0
        %762 = vmatpush1.msra.mxu0 0.0
        %763 = vmatprep.subr.mxu0 0.0
        %764 = vmatpush1.msra.mxu0 0.0
        %765 = vmatprep.subr.mxu0 0.0
        %766 = vmatpush1.msra.mxu0 0.0
        %767 = vmatprep.subr.mxu0 0.0
        %768 = vmatpush1.msra.mxu0 0.0
        %769 = vmatprep.subr.mxu0 0.0
        %770 = vmatpush1.msra.mxu0 0.0
        %771 = vmatprep.subr.mxu0 0.0
        %772 = vmatpush1.msra.mxu0 0.0
        %773 = vmatprep.subr.mxu0 0.0
        %774 = vmatpush1.msra.mxu0 0.0
        %775 = vmatprep.subr.mxu0 0.0
        %776 = vmatpush1.msra.mxu0 0.0
        %777 = vmatprep.subr.mxu0 0.0
        %778 = vmatpush1.msra.mxu0 0.0
        %779 = vmatprep.subr.mxu0 0.0
        %780 = vmatpush1.msra.mxu0 0.0
        %781 = vmatprep.subr.mxu0 0.0
        %782 = vmatpush1.msra.mxu0 0.0
        %783 = vmatprep.subr.mxu0 0.0
        %784 = vmatpush1.msra.mxu0 0.0
        %785 = vmatprep.subr.mxu0 0.0
        %786 = vmatpush1.msra.mxu0 0.0
        %787 = vmatprep.subr.mxu0 0.0
        %788 = vmatpush1.msra.mxu0 0.0
        %789 = vmatprep.subr.mxu0 0.0
        %790 = vmatpush1.msra.mxu0 %v661
        %791 = vmatprep.subr.mxu0 0.0
        %792 = vmatpush2.msra.mxu0 0.0
        %793 = vmatprep.subr.mxu0 0.0
        %794 = vmatpush2.msra.mxu0 0.0
        %795 = vmatprep.subr.mxu0 0.0
        %796 = vmatpush2.msra.mxu0 0.0
        %797 = vmatprep.subr.mxu0 0.0
        %798 = vmatpush2.msra.mxu0 0.0
        %799 = vmatprep.subr.mxu0 0.0
        %800 = vmatpush2.msra.mxu0 0.0
        %801 = vmatprep.subr.mxu0 0.0
        %802 = vmatpush2.msra.mxu0 0.0
        %803 = vmatprep.subr.mxu0 0.0
        %804 = vmatpush2.msra.mxu0 0.0
        %805 = vmatprep.subr.mxu0 0.0
        %806 = vmatpush2.msra.mxu0 0.0
        %807 = vmatprep.subr.mxu0 0.0
        %808 = vmatpush2.msra.mxu0 0.0
        %809 = vmatprep.subr.mxu0 0.0
        %810 = vmatpush2.msra.mxu0 0.0
        %811 = vmatprep.subr.mxu0 0.0
        %812 = vmatpush2.msra.mxu0 0.0
        %813 = vmatprep.subr.mxu0 0.0
        %814 = vmatpush2.msra.mxu0 0.0
        %815 = vmatprep.subr.mxu0 0.0
        %816 = vmatpush2.msra.mxu0 0.0
        %817 = vmatprep.subr.mxu0 0.0
        %818 = vmatpush2.msra.mxu0 0.0
        %819 = vmatprep.subr.mxu0 0.0
        %820 = vmatpush2.msra.mxu0 0.0
        %821 = vmatprep.subr.mxu0 0.0
        %822 = vmatpush2.msra.mxu0 0.0
        %823 = vmatprep.mubr.f32.mxu0 0.0
        %824 = vmatmul.mubr.f32.gmra.mxu0 %v757
        %v825 = vpop.f32.mrf.mxu0
        %v826 = vadd.f32 0.0, %v825
        %v827 = vpop.f32.mrf.mxu0
        %828 = vdwg.mxu0
        %829 = vst [vmem:[%s475] sm:$0xff] %v826
        %s830 = sand.u32 %s206, 1
        %s831 = scalar_lea.sflag [#allocation3], %s830
        %s832 = sand.u32 %s206, 1
        %s833 = smul.addr %s832, 8
        %s834 = scalar_lea.vmem [#allocation2], %s833
        %s835 = sand.u32 %s36, 1
        %s836 = scalar_lea.sflag [#allocation5], %s835
        %s837 = sand.u32 %s232, 1
        %s838 = smul.addr %s837, 8
        %s839 = scalar_lea.vmem [#allocation4], %s838
        %s840 = sand.u32 %s36, 1
        %s841 = scalar_lea.sflag [#allocation5], %s840
        %s842 = sand.u32 %s258, 1
        %s843 = smul.addr %s842, 8
        %s844 = scalar_lea.vmem [#allocation6], %s843
        %s845 = sand.u32 %s36, 1
        %s846 = scalar_lea.sflag [#allocation8], %s845
        %s847 = sand.u32 %s284, 1
        %s848 = smul.addr %s847, 8
        %s849 = scalar_lea.vmem [#allocation7], %s848
        %s850 = sand.u32 %s36, 1
        %s851 = scalar_lea.sflag [#allocation8], %s850
        %s852 = sand.u32 %s310, 1
        %s853 = smul.addr %s852, 8
        %s854 = scalar_lea.vmem [#allocation9], %s853
        %s855 = sand.u32 %s336, 1
        %s856 = scalar_lea.sflag [#allocation11], %s855
        %s857 = sand.u32 %s336, 1
        %s858 = smul.addr %s857, 8
        %s859 = scalar_lea.vmem [#allocation10], %s858
        // Predicated region
        $region49: #{single_head_attention.1} parent=47 // pred_check
          %p860 = pneg %p216
        $region50: #{single_head_attention.1} parent=47 // pred_check_branch
          %862 = sbr.rel (%p860) target = $region52
        $region51: #{single_head_attention.1} parent=47 // pred_region
          %s864 = ssub.s32 128, 128
          %865 = vsyncadd %s831, %s864
          %s866 = smul.addr %s36, 128
          %s867 = scalar_lea.hbm %s7, %s866
          %s869 = sshll.u32 %s834, 4
          %s870 = int_to_ptr.vmem [resolvable:$true] %s869
          %872 = dma.vmem_to_hbm [thread:$0]  %s870, 128, %s867, %s831
        $region52: #{single_head_attention.1} parent=47 // pred_fallthru
          _
        // Predicated region
        $region53: #{single_head_attention.1} parent=47 // pred_check
          %p873 = pneg %p242
        $region54: #{single_head_attention.1} parent=47 // pred_check_branch
          %875 = sbr.rel (%p873) target = $region56
        $region55: #{single_head_attention.1} parent=47 // pred_region
          %s877 = ssub.s32 128, 128
          %878 = vsyncadd %s836, %s877
          %s879 = smul.addr %s36, 128
          %s880 = scalar_lea.hbm %s8, %s879
          %s882 = sshll.u32 %s839, 4
          %s883 = int_to_ptr.vmem [resolvable:$true] %s882
          %885 = dma.vmem_to_hbm [thread:$0]  %s883, 128, %s880, %s836
        $region56: #{single_head_attention.1} parent=47 // pred_fallthru
          _
        // Predicated region
        $region57: #{single_head_attention.1} parent=47 // pred_check
          %p886 = pneg %p268
        $region58: #{single_head_attention.1} parent=47 // pred_check_branch
          %888 = sbr.rel (%p886) target = $region60
        $region59: #{single_head_attention.1} parent=47 // pred_region
          %s890 = ssub.s32 128, 128
          %891 = vsyncadd %s841, %s890
          %s892 = smul.addr %s36, 128
          %s893 = scalar_lea.hbm %s9, %s892
          %s895 = sshll.u32 %s844, 4
          %s896 = int_to_ptr.vmem [resolvable:$true] %s895
          %898 = dma.vmem_to_hbm [thread:$0]  %s896, 128, %s893, %s841
        $region60: #{single_head_attention.1} parent=47 // pred_fallthru
          _
        // Predicated region
        $region61: #{single_head_attention.1} parent=47 // pred_check
          %p899 = pneg %p294
        $region62: #{single_head_attention.1} parent=47 // pred_check_branch
          %901 = sbr.rel (%p899) target = $region64
        $region63: #{single_head_attention.1} parent=47 // pred_region
          %s903 = ssub.s32 128, 128
          %904 = vsyncadd %s846, %s903
          %s905 = smul.addr %s36, 128
          %s906 = scalar_lea.hbm %s10, %s905
          %s908 = sshll.u32 %s849, 4
          %s909 = int_to_ptr.vmem [resolvable:$true] %s908
          %911 = dma.vmem_to_hbm [thread:$0]  %s909, 128, %s906, %s846
        $region64: #{single_head_attention.1} parent=47 // pred_fallthru
          _
        // Predicated region
        $region65: #{single_head_attention.1} parent=47 // pred_check
          %p912 = pneg %p320
        $region66: #{single_head_attention.1} parent=47 // pred_check_branch
          %914 = sbr.rel (%p912) target = $region68
        $region67: #{single_head_attention.1} parent=47 // pred_region
          %s916 = ssub.s32 128, 128
          %917 = vsyncadd %s851, %s916
          %s918 = smul.addr %s36, 128
          %s919 = scalar_lea.hbm %s11, %s918
          %s921 = sshll.u32 %s854, 4
          %s922 = int_to_ptr.vmem [resolvable:$true] %s921
          %924 = dma.vmem_to_hbm [thread:$0]  %s922, 128, %s919, %s851
        $region68: #{single_head_attention.1} parent=47 // pred_fallthru
          _
        // Predicated region
        $region69: #{single_head_attention.1} parent=47 // pred_check
          %p925 = pneg %p346
        $region70: #{single_head_attention.1} parent=47 // pred_check_branch
          %927 = sbr.rel (%p925) target = $region72
        $region71: #{single_head_attention.1} parent=47 // pred_region
          %s929 = ssub.s32 128, 128
          %930 = vsyncadd %s856, %s929
          %s931 = smul.addr %s36, 128
          %s932 = scalar_lea.hbm %s12, %s931
          %s934 = sshll.u32 %s859, 4
          %s935 = int_to_ptr.vmem [resolvable:$true] %s934
          %937 = dma.vmem_to_hbm [thread:$0]  %s935, 128, %s932, %s856
        $region72: #{single_head_attention.1} parent=47 // pred_fallthru
          _
      $region48: #{single_head_attention.1} parent=5 // pred_fallthru
        _
      %p938 = scmp.le.s32.totalorder 2, %s31
      // Predicated region
      $region73: #{single_head_attention.1} parent=5 // pred_check
        %p939 = pneg %p938
      $region74: #{single_head_attention.1} parent=5 // pred_check_branch
        %941 = sbr.rel (%p939) target = $region76
      $region75: #{single_head_attention.1} parent=5 // pred_region
        %s942 = ssub.s32 %s31, 2
        // Predicated region
        $region77: #{single_head_attention.1} parent=75 // pred_check
          %p943 = pneg %p222
        $region78: #{single_head_attention.1} parent=75 // pred_check_branch
          %945 = sbr.rel (%p943) target = $region80
        $region79: #{single_head_attention.1} parent=75 // pred_region
          %s946 = sand.u32 %s207, 1
          %s947 = scalar_lea.sflag [#allocation3], %s946
          %s948 = sand.u32 %s207, 1
          %s949 = smul.addr %s948, 8
          %s950 = scalar_lea.vmem [#allocation2], %s949
          %951 = dma.done %s947, 128
        $region80: #{single_head_attention.1} parent=75 // pred_fallthru
          _
        // Predicated region
        $region81: #{single_head_attention.1} parent=75 // pred_check
          %p952 = pneg %p248
        $region82: #{single_head_attention.1} parent=75 // pred_check_branch
          %954 = sbr.rel (%p952) target = $region84
        $region83: #{single_head_attention.1} parent=75 // pred_region
          %s955 = sand.u32 %s37, 1
          %s956 = scalar_lea.sflag [#allocation5], %s955
          %s957 = sand.u32 %s233, 1
          %s958 = smul.addr %s957, 8
          %s959 = scalar_lea.vmem [#allocation4], %s958
          %960 = dma.done %s956, 128
        $region84: #{single_head_attention.1} parent=75 // pred_fallthru
          _
        // Predicated region
        $region85: #{single_head_attention.1} parent=75 // pred_check
          %p961 = pneg %p274
        $region86: #{single_head_attention.1} parent=75 // pred_check_branch
          %963 = sbr.rel (%p961) target = $region88
        $region87: #{single_head_attention.1} parent=75 // pred_region
          %s964 = sand.u32 %s37, 1
          %s965 = scalar_lea.sflag [#allocation5], %s964
          %s966 = sand.u32 %s259, 1
          %s967 = smul.addr %s966, 8
          %s968 = scalar_lea.vmem [#allocation6], %s967
          %969 = dma.done %s965, 128
        $region88: #{single_head_attention.1} parent=75 // pred_fallthru
          _
        // Predicated region
        $region89: #{single_head_attention.1} parent=75 // pred_check
          %p970 = pneg %p300
        $region90: #{single_head_attention.1} parent=75 // pred_check_branch
          %972 = sbr.rel (%p970) target = $region92
        $region91: #{single_head_attention.1} parent=75 // pred_region
          %s973 = sand.u32 %s37, 1
          %s974 = scalar_lea.sflag [#allocation8], %s973
          %s975 = sand.u32 %s285, 1
          %s976 = smul.addr %s975, 8
          %s977 = scalar_lea.vmem [#allocation7], %s976
          %978 = dma.done %s974, 128
        $region92: #{single_head_attention.1} parent=75 // pred_fallthru
          _
        // Predicated region
        $region93: #{single_head_attention.1} parent=75 // pred_check
          %p979 = pneg %p326
        $region94: #{single_head_attention.1} parent=75 // pred_check_branch
          %981 = sbr.rel (%p979) target = $region96
        $region95: #{single_head_attention.1} parent=75 // pred_region
          %s982 = sand.u32 %s37, 1
          %s983 = scalar_lea.sflag [#allocation8], %s982
          %s984 = sand.u32 %s311, 1
          %s985 = smul.addr %s984, 8
          %s986 = scalar_lea.vmem [#allocation9], %s985
          %987 = dma.done %s983, 128
        $region96: #{single_head_attention.1} parent=75 // pred_fallthru
          _
        // Predicated region
        $region97: #{single_head_attention.1} parent=75 // pred_check
          %p988 = pneg %p352
        $region98: #{single_head_attention.1} parent=75 // pred_check_branch
          %990 = sbr.rel (%p988) target = $region100
        $region99: #{single_head_attention.1} parent=75 // pred_region
          %s991 = sand.u32 %s337, 1
          %s992 = scalar_lea.sflag [#allocation11], %s991
          %s993 = sand.u32 %s337, 1
          %s994 = smul.addr %s993, 8
          %s995 = scalar_lea.vmem [#allocation10], %s994
          %996 = dma.done %s992, 128
        $region100: #{single_head_attention.1} parent=75 // pred_fallthru
          _
      $region76: #{single_head_attention.1} parent=5 // pred_fallthru
        _
    $region6: #{single_head_attention.1} parent=1 // loop_footer
      %s35 = sadd.s32 1, %s31
    $region7: #{single_head_attention.1} parent=1 // loop_footer_branch
      %30 = sbr.rel target = $region3
    $region8: #{single_head_attention.1} parent=1 // loop_exit
      _
    %997 = vsyncpa [#allocation3], 1
    %s998 = scalar_lea.sflag [#allocation3], 1
    %999 = vsyncpa %s998, 1
    %1000 = vsyncpa [#allocation5], 1
    %s1001 = scalar_lea.sflag [#allocation5], 1
    %1002 = vsyncpa %s1001, 1
    %1003 = vsyncpa [#allocation8], 1
    %s1004 = scalar_lea.sflag [#allocation8], 1
    %1005 = vsyncpa %s1004, 1
    %1006 = vsyncpa [#allocation11], 1
    %s1007 = scalar_lea.sflag [#allocation11], 1
    %1008 = vsyncpa %s1007, 1

</llo_original>
